<compile_context>
chip_gen: v7x
topology: tpu7x:2x2x1
jax: 0.10.0
libtpu: 0.0.40
codegen_flags: <defaults>
</compile_context>

<pallas_src>
import jax
import jax.numpy as jnp
from jax.experimental import pallas as pl
from jax.experimental.pallas import tpu as pltpu


def _copy_kernel(x_ref, o_ref):
    # Identical in/out tile shapes; no in-kernel slicing / relayout.
    o_ref[...] = x_ref[...]


def _round_up(x: int, m: int) -> int:
    return ((x + m - 1) // m) * m


def _cdiv(a: int, b: int) -> int:
    return -(-a // b)


_TILE_BYTES_BUDGET = 4 * 1024 * 1024   # per-tile VMEM budget (~4 MiB)
_MIN_PALLAS_BYTES = 512 * 1024         # below this, a fused slice beats any kernel


def chomp1d(x: jax.Array, chomp_size: int, *,
            min_pallas_bytes: int = _MIN_PALLAS_BYTES) -> jax.Array:
    """Pallas implementation of Chomp1d.forward: x[:, :, :-chomp_size]."""
    assert x.ndim == 3, "expected (N, C, L) input"
    n, c, l = x.shape
    assert 0 <= chomp_size < l, "chomp_size must be in [0, L)"
    if chomp_size == 0:
        # NOTE: PyTorch's `x[:, :, :-0]` is empty; a real TCN never uses
        # chomp_size == 0, so treat it as a pass-through (documented deviation).
        return x
    l_out = l - chomp_size

    rows = n * c
    itemsize = jnp.dtype(x.dtype).itemsize
    out_bytes = rows * l_out * itemsize

    # --- fast path: tiny tensors (the drive2vec TCN shapes) ------------------
    # pallas_call overhead (launch + ~0.35 µs/grid step) exceeds the whole copy
    # for small tensors; a plain slice fuses into the consumer for free.
    if out_bytes < min_pallas_bytes:
        return x[:, :, :l_out]

    # Collapse (N, C) into one dense row axis: full sublane utilization even
    # for small channel counts, fewer/larger DMAs.
    x2 = x.reshape(rows, l)

    # --- tile selection: lane-first, byte-budgeted ---------------------------
    row_unit = 8 * max(1, 4 // itemsize)      # sublane packing: f32→8, bf16→16, int8→32
    l_out_padded = _round_up(l_out, 128)

    # Lane block: cover l_out when possible; cap so a single row_unit-tall tile
    # still fits the byte budget (long contiguous HBM chunks per row).
    lane_cap = max(128, (_TILE_BYTES_BUDGET // (row_unit * itemsize)) // 128 * 128)
    lane_block = min(l_out_padded, lane_cap)

    # Row block: grow only after lanes cover l_out; fill remaining budget with
    # a multiple of the sublane packing, or take the full extent if it fits.
    max_rows_by_budget = max(
        row_unit,
        (_TILE_BYTES_BUDGET // (lane_block * itemsize)) // row_unit * row_unit,
    )
    row_block = rows if rows <= max_rows_by_budget else max_rows_by_budget

    # v7x has 2 TensorCores: a problem big enough to reach the Pallas path
    # should have >= 2 parallel grid steps so both cores / DMA queues work.
    if _cdiv(rows, row_block) <= 1 and _cdiv(l_out, lane_block) <= 1:
        if rows >= 2 * row_unit:
            row_block = _round_up(_cdiv(rows, 2), row_unit)
        elif l_out_padded >= 256:
            lane_block = _round_up(_cdiv(l_out, 2), 128)

    grid = (_cdiv(rows, row_block), _cdiv(l_out, lane_block))  # lanes innermost

    # Explicit VMEM budget: 2(in)+2(out) double-buffered tiles + headroom.
    # Keeps bigger tiles legal on v5e's 16 MiB scoped default and stays well
    # under v7x's 64 MiB physical VMEM.
    tile_bytes = row_block * lane_block * itemsize
    vmem_limit = min(max(16 << 20, 4 * tile_bytes + (4 << 20)), 48 << 20)

    cost = pl.CostEstimate(
        flops=0,
        transcendentals=0,
        bytes_accessed=2 * rows * l_out * itemsize,  # read + write of kept data
    )

    out2 = pl.pallas_call(
        _copy_kernel,
        out_shape=jax.ShapeDtypeStruct((rows, l_out), x.dtype),
        grid_spec=pltpu.PrefetchScalarGridSpec(
            num_scalar_prefetch=0,
            grid=grid,
            in_specs=[pl.BlockSpec((row_block, lane_block), lambda i, j: (i, j))],
            out_specs=pl.BlockSpec((row_block, lane_block), lambda i, j: (i, j)),
        ),
        compiler_params=pltpu.CompilerParams(
            dimension_semantics=("parallel", "parallel"),
            vmem_limit_bytes=vmem_limit,
        ),
        cost_estimate=cost,
    )(x2)

    return out2.reshape(n, c, l_out)


if __name__ == "__main__":
    key = jax.random.PRNGKey(0)

    # Small shapes consistent with a TCN intermediate: (batch=2, channels=4, length=16)
    N, C, L = 2, 4, 16
    chomp_size = 3  # e.g. (kernel_size - 1) * dilation of a causal conv
    x = jax.random.normal(key, (N, C, L), dtype=jnp.float32)
    ref = x[:, :, :-chomp_size]

    # 1) Default path: tiny tensor takes the fused-slice fast path.
    out_fast = jax.block_until_ready(chomp1d(x, chomp_size))
    assert out_fast.shape == (N, C, L - chomp_size), out_fast.shape
    assert out_fast.dtype == x.dtype
    assert jnp.array_equal(out_fast, ref)

    # 2) Forced Pallas path on the same tiny shape (exercises the kernel itself).
    out_pallas = jax.block_until_ready(chomp1d(x, chomp_size, min_pallas_bytes=0))
    assert jnp.array_equal(out_pallas, ref)

    # 3) Slightly larger shape: multi-step grid, lane edge-block clamping
    #    (l_out not a multiple of 128, last lane window extends past L).
    N2, C2, L2, chomp2 = 2, 8, 1000, 9
    x_big = jax.random.normal(jax.random.PRNGKey(0), (N2, C2, L2), dtype=jnp.float32)
    ref_big = x_big[:, :, :-chomp2]
    out_big = jax.block_until_ready(chomp1d(x_big, chomp2, min_pallas_bytes=0))
    assert out_big.shape == ref_big.shape
    assert jnp.array_equal(out_big, ref_big)

    # 4) bf16 (sublane-packed dtype) through the Pallas path — pure copy, exact.
    x_bf16 = x_big.astype(jnp.bfloat16)
    out_bf16 = jax.block_until_ready(chomp1d(x_bf16, chomp2, min_pallas_bytes=0))
    assert jnp.array_equal(out_bf16, x_bf16[:, :, :-chomp2])

    print("KERNEL_OK")
</pallas_src>

<mosaic_0001>
module attributes {stable_mosaic.version = 11 : i64} {
  func.func @_copy_kernel(%arg0: i32, %arg1: i32, %arg2: memref<8x128xf32, #tpu.memory_space<vmem>>, %arg3: memref<8x128xf32, #tpu.memory_space<vmem>>) attributes {dimension_semantics = [#tpu.dimension_semantics<parallel>, #tpu.dimension_semantics<parallel>], iteration_bounds = array<i64: 1, 1>, scalar_prefetch = 0 : i64, scratch_operands = 0 : i64, tpu.core_type = #tpu.core_type<tc>, window_params = [{transform_indices = @transform_0, window_bounds = array<i64: 8, 128>}, {transform_indices = @transform_1, window_bounds = array<i64: 8, 128>}]} {
    %c0 = arith.constant 0 : index
    %c0_0 = arith.constant 0 : index
    %0 = vector.load %arg2[%c0, %c0_0] : memref<8x128xf32, #tpu.memory_space<vmem>>, vector<8x128xf32>
    %c0_1 = arith.constant 0 : index
    %c0_2 = arith.constant 0 : index
    %1 = vector.load %arg3[%c0_1, %c0_2] : memref<8x128xf32, #tpu.memory_space<vmem>>, vector<8x128xf32>
    tpu.vector_store %arg3[%c0_1, %c0_2], %0 {strides = array<i32>} : memref<8x128xf32, #tpu.memory_space<vmem>>, vector<8x128xf32>,
    return
  }
  func.func @transform_0(%arg0: i32, %arg1: i32) -> (i32, i32) {
    %c0_i32 = arith.constant 0 : i32
    return %arg0, %arg1 : i32, i32
  }
  func.func @transform_1(%arg0: i32, %arg1: i32) -> (i32, i32) {
    %c0_i32 = arith.constant 0 : i32
    return %arg0, %arg1 : i32, i32
  }
}

</mosaic_0001>

<llo_original>
// kernel: tpu_custom_call.1
$region0: #{tpu_custom_call.1}
  #allocation0 [shape = 'u32[]', space=smem, size = 0x4, offset = 0x4, fixed_abs, tag = 'smem constant byte address 0x4 - core index']
  #allocation1 [shape = 'u32[144,128]{1,0:T(1,128)}', space=vmem, size = 0x12000, scoped, tag = 'internal scratch']
  %s0 = inlined_call_operand.hbm [shape: f32[8,16], index: 0, kind: input, shape index: {}]
  %s1 = inlined_call_operand.hbm [shape: f32[8,13], index: 1, kind: output, shape index: {}]
  %s2 = sld [smem:[#allocation0]]
  $region18: #{tpu_custom_call.1} parent=0
    _
  %s4 = ssub.s32 1, %s2
  %s5 = scalar_select 0, %s4, %s2
  $region1: #{tpu_custom_call.1} parent=0
    #allocation2 [shape = 'u8[4096]{0}', space=vmem, size = 0x1000, scoped, tag = 'input window, operand 0, single buffered']
    #allocation3 [shape = 's32[1]{0}', space=sflag, size = 0x4, scoped, tag = 'scoped memory for tpu_custom_call.1']
    #allocation4 [shape = 's32[1]{0}', space=sflag, size = 0x4, scoped, tag = 'scoped memory for tpu_custom_call.1']
    #allocation5 [shape = 'u8[4096]{0}', space=vmem, size = 0x1000, scoped, tag = 'output window, operand 0, single buffered']
    %6 = vsyncpa [#allocation3], 0
    %7 = vsyncpa [#allocation4], 0
    // Predicated region
    $region2: #{tpu_custom_call.1} parent=1 // pred_check
      _
    $region3: #{tpu_custom_call.1} parent=1 // pred_check_branch
      %9 = sbr.rel (0) target = $region5
    $region4: #{tpu_custom_call.1} parent=1 // pred_region
      %s11 = ssub.s32 128, 128
      %12 = vsyncadd [#allocation3], %s11
      %s14 = sshll.u32 [#allocation2], 4
      %s15 = int_to_ptr.vmem [resolvable:$true] %s14
      %17 = dma.hbm_to_vmem [thread:$0]  %s0, 128, %s15, [#allocation3]
    $region5: #{tpu_custom_call.1} parent=1 // pred_fallthru
      _
    // Predicated region
    $region6: #{tpu_custom_call.1} parent=1 // pred_check
      _
    $region7: #{tpu_custom_call.1} parent=1 // pred_check_branch
      %19 = sbr.rel (0) target = $region9
    $region8: #{tpu_custom_call.1} parent=1 // pred_region
      %20 = dma.done [#allocation3], 128
    $region9: #{tpu_custom_call.1} parent=1 // pred_fallthru
      _
    %v21 = vld [vmem:[#allocation2] sm:$0xff]
    %22 = vst [vmem:[#allocation5] sm:$0xff] %v21
    // Predicated region
    $region10: #{tpu_custom_call.1} parent=1 // pred_check
      _
    $region11: #{tpu_custom_call.1} parent=1 // pred_check_branch
      %24 = sbr.rel (0) target = $region13
    $region12: #{tpu_custom_call.1} parent=1 // pred_region
      %s26 = ssub.s32 128, 128
      %27 = vsyncadd [#allocation4], %s26
      %s29 = sshll.u32 [#allocation5], 4
      %s30 = int_to_ptr.vmem [resolvable:$true] %s29
      %32 = dma.vmem_to_hbm [thread:$0]  %s30, 128, %s1, [#allocation4]
    $region13: #{tpu_custom_call.1} parent=1 // pred_fallthru
      _
    // Predicated region
    $region14: #{tpu_custom_call.1} parent=1 // pred_check
      _
    $region15: #{tpu_custom_call.1} parent=1 // pred_check_branch
      %34 = sbr.rel (0) target = $region17
    $region16: #{tpu_custom_call.1} parent=1 // pred_region
      %35 = dma.done [#allocation4], 128
    $region17: #{tpu_custom_call.1} parent=1 // pred_fallthru
      _
    %36 = vsyncpa [#allocation3], 1
    %37 = vsyncpa [#allocation4], 1

</llo_original>
